<compile_context>
chip_gen: v7x
topology: tpu7x:2x2x1
jax: 0.10.0
libtpu: 0.0.40
codegen_flags: <defaults>
</compile_context>

<pallas_src>
import jax
import jax.numpy as jnp
import numpy as np
from jax.experimental import pallas as pl
from jax.experimental.pallas import tpu as pltpu

EPS = 1e-5


def _make_block_kernel(N, Cin, Cout, H, W):
    """Build the fused Block kernel for static shapes."""
    H1, W1 = H - 2, W - 2          # valid extent after conv1
    H2, W2 = H - 4, W - 4          # valid extent after conv2
    HW = H * W                     # per-sample flattened spatial size (row stride W)
    L = N * HW                     # lane extent of the activation slab
    inv_cnt1 = 1.0 / float(N * H1 * W1)
    inv_cnt2 = 1.0 / float(N * H2 * W2)

    def conv_relu_bn(a, w_mat, bias, gamma, beta, mask, inv_cnt):
        """One stage on a lane-dense (C_in, L) slab -> (C_out, L) slab."""
        # im2col: rolling by L - (kh*W + kw) puts a[p + kh*W + kw] at lane p;
        # wrap-around lanes are garbage but are masked out of the BN stats and
        # never referenced by valid positions downstream.
        taps = []
        for kh in range(3):
            for kw in range(3):
                d = kh * W + kw
                taps.append(a if d == 0 else pltpu.roll(a, L - d, 1))
        patches = jnp.concatenate(taps, axis=0)                     # (9*C_in, L)
        # One MXU matmul with K = 9*C_in, + bias, then ReLU.
        y = jnp.dot(w_mat, patches, preferred_element_type=jnp.float32) + bias
        r = jnp.maximum(y, 0.0)
        # Training-mode BatchNorm, single-pass masked statistics.
        rm = r * mask                                               # (C_out, L)
        s1 = jnp.sum(rm, axis=1, keepdims=True)                     # (C_out, 1)
        s2 = jnp.sum(rm * r, axis=1, keepdims=True)
        mean = s1 * inv_cnt
        var = s2 * inv_cnt - mean * mean                            # biased var
        scale = jax.lax.rsqrt(var + EPS) * gamma
        return (r - mean) * scale + beta

    def kernel(x_ref, w1_ref, b1_ref, g1_ref, be1_ref,
               w2_ref, b2_ref, g2_ref, be2_ref,
               m1_ref, m2_ref, sel_ref, o_ref):
        # (N, Cin, H*W) -> lane-dense (Cin, N*H*W) via a lane-aligned concat;
        # no NCHW<->NHWC transpose of the activations anywhere.
        x = x_ref[...]
        a0 = jnp.concatenate([x[n] for n in range(N)], axis=1)      # (Cin, L)

        h1 = conv_relu_bn(a0, w1_ref[...], b1_ref[...], g1_ref[...],
                          be1_ref[...], m1_ref[...], inv_cnt1)      # (Cout, L)
        z = conv_relu_bn(h1, w2_ref[...], b2_ref[...], g2_ref[...],
                         be2_ref[...], m2_ref[...], inv_cnt2)       # (Cout, L)

        # Gather the valid (h < H2, w < W2) positions into a lane-dense
        # (N*Cout, H2*W2) output slab with one tiny selection matmul per sample.
        sel = sel_ref[...]                                          # (HW, H2*W2)
        for n in range(N):
            o_ref[n * Cout:(n + 1) * Cout, :] = jnp.dot(
                z[:, n * HW:(n + 1) * HW], sel,
                preferred_element_type=jnp.float32)

    return kernel


def _masks_and_selector(N, H, W):
    """Host-side constants: BN validity masks and the output gather matrix."""
    H1, W1, H2, W2 = H - 2, W - 2, H - 4, W - 4
    hh = np.arange(H)[:, None]
    ww = np.arange(W)[None, :]
    m1 = ((hh < H1) & (ww < W1)).astype(np.float32).reshape(-1)     # (H*W,)
    m2 = ((hh < H2) & (ww < W2)).astype(np.float32).reshape(-1)
    mask1 = np.tile(m1, N).reshape(1, N * H * W)
    mask2 = np.tile(m2, N).reshape(1, N * H * W)
    sel = np.zeros((H * W, H2 * W2), np.float32)
    for ho in range(H2):
        for wo in range(W2):
            sel[ho * W + wo, ho * W2 + wo] = 1.0
    return jnp.asarray(mask1), jnp.asarray(mask2), jnp.asarray(sel)


def _flatten_conv_weight(w_hwio):
    # (3, 3, Ci, Co) -> (Co, 9*Ci); column index = (kh*3 + kw)*Ci + ci.
    kh, kw, ci, co = w_hwio.shape
    return jnp.transpose(w_hwio, (3, 0, 1, 2)).reshape(co, kh * kw * ci)


@jax.jit
def block_forward(x_nchw, params):
    """Full Block forward. Input/output are NCHW like the PyTorch module."""
    N, Cin, H, W = x_nchw.shape
    Cout = params["w1"].shape[-1]
    H2, W2 = H - 4, W - 4
    mask1, mask2, sel = _masks_and_selector(N, H, W)

    vmem = pl.BlockSpec(memory_space=pltpu.MemorySpace.VMEM)
    out_slab = pl.pallas_call(
        _make_block_kernel(N, Cin, Cout, H, W),
        out_shape=jax.ShapeDtypeStruct((N * Cout, H2 * W2), jnp.float32),
        in_specs=[vmem] * 12,
        out_specs=vmem,
    )(
        x_nchw.reshape(N, Cin, H * W),                 # bitcast reshape, no copy
        _flatten_conv_weight(params["w1"]),
        params["b1"].reshape(Cout, 1),
        params["g1"].reshape(Cout, 1),
        params["be1"].reshape(Cout, 1),
        _flatten_conv_weight(params["w2"]),
        params["b2"].reshape(Cout, 1),
        params["g2"].reshape(Cout, 1),
        params["be2"].reshape(Cout, 1),
        mask1, mask2, sel,
    )
    return out_slab.reshape(N, Cout, H2, W2)           # bitcast reshape, no copy


# ---------------- pure-JAX reference (for correctness check) -----------------
def _ref_block(x_nchw, params):
    def conv(x, w, b):
        y = jax.lax.conv_general_dilated(
            x, w, window_strides=(1, 1), padding="VALID",
            dimension_numbers=("NHWC", "HWIO", "NHWC"),
            precision=jax.lax.Precision.HIGHEST)
        return y + b

    def bn(x, g, be):
        mean = jnp.mean(x, axis=(0, 1, 2), keepdims=True)
        var = jnp.mean((x - mean) ** 2, axis=(0, 1, 2), keepdims=True)
        return (x - mean) * jax.lax.rsqrt(var + EPS) * g + be

    x = jnp.transpose(x_nchw, (0, 2, 3, 1))
    h = bn(jnp.maximum(conv(x, params["w1"], params["b1"]), 0.0),
           params["g1"], params["be1"])
    h = bn(jnp.maximum(conv(h, params["w2"], params["b2"]), 0.0),
           params["g2"], params["be2"])
    return jnp.transpose(h, (0, 3, 1, 2))


if __name__ == "__main__":
    N, Cin, Cout, H, W = 2, 4, 8, 16, 16

    key = jax.random.PRNGKey(0)
    k1, k2, k3, k4, kx = jax.random.split(key, 5)

    # Deterministic synthetic parameters (shapes follow Block.__init__).
    # Conv weights ~ fan-in scaled normals; BN gamma=1, beta=0 (PyTorch init).
    params = {
        "w1": jax.random.normal(k1, (3, 3, Cin, Cout), jnp.float32) / np.sqrt(9 * Cin),
        "b1": jax.random.normal(k2, (Cout,), jnp.float32) * 0.1,
        "g1": jnp.ones((Cout,), jnp.float32),
        "be1": jnp.zeros((Cout,), jnp.float32),
        "w2": jax.random.normal(k3, (3, 3, Cout, Cout), jnp.float32) / np.sqrt(9 * Cout),
        "b2": jax.random.normal(k4, (Cout,), jnp.float32) * 0.1,
        "g2": jnp.ones((Cout,), jnp.float32),
        "be2": jnp.zeros((Cout,), jnp.float32),
    }

    x = jax.random.normal(kx, (N, Cin, H, W), jnp.float32)  # NCHW, like PyTorch

    out = jax.block_until_ready(block_forward(x, params))
    assert out.shape == (N, Cout, H - 4, W - 4), out.shape

    ref = jax.block_until_ready(_ref_block(x, params))
    np.testing.assert_allclose(np.asarray(out), np.asarray(ref), rtol=2e-3, atol=2e-3)

    print("KERNEL_OK")
</pallas_src>

<mosaic_0001>
module attributes {stable_mosaic.version = 11 : i64} {
  func.func @kernel(%arg0: memref<2x4x256xf32, #tpu.memory_space<vmem>>, %arg1: memref<8x36xf32, #tpu.memory_space<vmem>>, %arg2: memref<8x1xf32, #tpu.memory_space<vmem>>, %arg3: memref<8x1xf32, #tpu.memory_space<vmem>>, %arg4: memref<8x1xf32, #tpu.memory_space<vmem>>, %arg5: memref<8x72xf32, #tpu.memory_space<vmem>>, %arg6: memref<8x1xf32, #tpu.memory_space<vmem>>, %arg7: memref<8x1xf32, #tpu.memory_space<vmem>>, %arg8: memref<8x1xf32, #tpu.memory_space<vmem>>, %arg9: memref<1x512xf32, #tpu.memory_space<vmem>>, %arg10: memref<1x512xf32, #tpu.memory_space<vmem>>, %arg11: memref<256x144xf32, #tpu.memory_space<vmem>>, %arg12: memref<16x144xf32, #tpu.memory_space<vmem>>) attributes {dimension_semantics = [], scalar_prefetch = 0 : i64, scratch_operands = 0 : i64, tpu.core_type = #tpu.core_type<tc>} {
    %c0 = arith.constant 0 : index
    %c0_0 = arith.constant 0 : index
    %c0_1 = arith.constant 0 : index
    %0 = vector.load %arg0[%c0, %c0_0, %c0_1] : memref<2x4x256xf32, #tpu.memory_space<vmem>>, vector<2x4x256xf32>
    %1 = vector.extract_strided_slice %0 {offsets = [0, 0, 0], sizes = [1, 4, 256], strides = [1, 1, 1]} : vector<2x4x256xf32> to vector<1x4x256xf32>
    %2 = vector.shape_cast %1 : vector<1x4x256xf32> to vector<4x256xf32>
    %3 = vector.extract_strided_slice %0 {offsets = [1, 0, 0], sizes = [1, 4, 256], strides = [1, 1, 1]} : vector<2x4x256xf32> to vector<1x4x256xf32>
    %4 = vector.shape_cast %3 : vector<1x4x256xf32> to vector<4x256xf32>
    %5 = tpu.concatenate %2, %4 in 1 : vector<4x256xf32>, vector<4x256xf32> -> vector<4x512xf32>
    %c0_2 = arith.constant 0 : index
    %c0_3 = arith.constant 0 : index
    %6 = vector.load %arg1[%c0_2, %c0_3] : memref<8x36xf32, #tpu.memory_space<vmem>>, vector<8x36xf32>
    %c0_4 = arith.constant 0 : index
    %c0_5 = arith.constant 0 : index
    %7 = vector.load %arg2[%c0_4, %c0_5] : memref<8x1xf32, #tpu.memory_space<vmem>>, vector<8x1xf32>
    %c0_6 = arith.constant 0 : index
    %c0_7 = arith.constant 0 : index
    %8 = vector.load %arg3[%c0_6, %c0_7] : memref<8x1xf32, #tpu.memory_space<vmem>>, vector<8x1xf32>
    %c0_8 = arith.constant 0 : index
    %c0_9 = arith.constant 0 : index
    %9 = vector.load %arg4[%c0_8, %c0_9] : memref<8x1xf32, #tpu.memory_space<vmem>>, vector<8x1xf32>
    %c0_10 = arith.constant 0 : index
    %c0_11 = arith.constant 0 : index
    %10 = vector.load %arg9[%c0_10, %c0_11] : memref<1x512xf32, #tpu.memory_space<vmem>>, vector<1x512xf32>
    %c511_i32 = arith.constant 511 : i32
    %11 = tpu.dynamic_rotate %5 by %c511_i32 dim 1 : vector<4x512xf32>, i32 -> vector<4x512xf32>
    %c510_i32 = arith.constant 510 : i32
    %12 = tpu.dynamic_rotate %5 by %c510_i32 dim 1 : vector<4x512xf32>, i32 -> vector<4x512xf32>
    %c496_i32 = arith.constant 496 : i32
    %13 = tpu.dynamic_rotate %5 by %c496_i32 dim 1 : vector<4x512xf32>, i32 -> vector<4x512xf32>
    %c495_i32 = arith.constant 495 : i32
    %14 = tpu.dynamic_rotate %5 by %c495_i32 dim 1 : vector<4x512xf32>, i32 -> vector<4x512xf32>
    %c494_i32 = arith.constant 494 : i32
    %15 = tpu.dynamic_rotate %5 by %c494_i32 dim 1 : vector<4x512xf32>, i32 -> vector<4x512xf32>
    %c480_i32 = arith.constant 480 : i32
    %16 = tpu.dynamic_rotate %5 by %c480_i32 dim 1 : vector<4x512xf32>, i32 -> vector<4x512xf32>
    %c479_i32 = arith.constant 479 : i32
    %17 = tpu.dynamic_rotate %5 by %c479_i32 dim 1 : vector<4x512xf32>, i32 -> vector<4x512xf32>
    %c478_i32 = arith.constant 478 : i32
    %18 = tpu.dynamic_rotate %5 by %c478_i32 dim 1 : vector<4x512xf32>, i32 -> vector<4x512xf32>
    %19 = tpu.concatenate %5, %11, %12, %13, %14, %15, %16, %17, %18 in 0 : vector<4x512xf32>, vector<4x512xf32>, vector<4x512xf32>, vector<4x512xf32>, vector<4x512xf32>, vector<4x512xf32>, vector<4x512xf32>, vector<4x512xf32>, vector<4x512xf32> -> vector<36x512xf32>
    %cst = arith.constant dense<0.000000e+00> : vector<8x512xf32>
    %20 = tpu.matmul %6, %19, %cst {dimension_numbers = #tpu.dot_dimension_numbers<[1], [0], [0], [1], [0, 0, 1, 1], [], []>} : vector<8x36xf32>, vector<36x512xf32>, vector<8x512xf32> -> vector<8x512xf32>
    %21 = vector.broadcast %7 : vector<8x1xf32> to vector<8x512xf32>
    %22 = arith.addf %20, %21 : vector<8x512xf32>
    %cst_12 = arith.constant 0.000000e+00 : f32
    %23 = vector.broadcast %cst_12 : f32 to vector<8x512xf32>
    %24 = arith.maximumf %22, %23 : vector<8x512xf32>
    %25 = vector.broadcast %10 : vector<1x512xf32> to vector<8x512xf32>
    %26 = arith.mulf %24, %25 : vector<8x512xf32>
    %cst_13 = arith.constant dense<0.000000e+00> : vector<8xf32>
    %27 = vector.multi_reduction <add>, %26, %cst_13 [1] : vector<8x512xf32> to vector<8xf32>
    %28 = vector.shape_cast %27 : vector<8xf32> to vector<8x1xf32>
    %29 = arith.mulf %26, %24 : vector<8x512xf32>
    %cst_14 = arith.constant dense<0.000000e+00> : vector<8xf32>
    %30 = vector.multi_reduction <add>, %29, %cst_14 [1] : vector<8x512xf32> to vector<8xf32>
    %31 = vector.shape_cast %30 : vector<8xf32> to vector<8x1xf32>
    %cst_15 = arith.constant 0.00255102036 : f32
    %32 = vector.broadcast %cst_15 : f32 to vector<8x1xf32>
    %33 = arith.mulf %28, %32 : vector<8x1xf32>
    %cst_16 = arith.constant 0.00255102036 : f32
    %34 = vector.broadcast %cst_16 : f32 to vector<8x1xf32>
    %35 = arith.mulf %31, %34 : vector<8x1xf32>
    %36 = arith.mulf %33, %33 : vector<8x1xf32>
    %37 = arith.subf %35, %36 : vector<8x1xf32>
    %cst_17 = arith.constant 9.99999974E-6 : f32
    %38 = vector.broadcast %cst_17 : f32 to vector<8x1xf32>
    %39 = arith.addf %37, %38 : vector<8x1xf32>
    %40 = math.rsqrt %39 : vector<8x1xf32>
    %41 = arith.mulf %40, %8 : vector<8x1xf32>
    %42 = vector.broadcast %33 : vector<8x1xf32> to vector<8x512xf32>
    %43 = arith.subf %24, %42 : vector<8x512xf32>
    %44 = vector.broadcast %41 : vector<8x1xf32> to vector<8x512xf32>
    %45 = arith.mulf %43, %44 : vector<8x512xf32>
    %46 = vector.broadcast %9 : vector<8x1xf32> to vector<8x512xf32>
    %47 = arith.addf %45, %46 : vector<8x512xf32>
    %c0_18 = arith.constant 0 : index
    %c0_19 = arith.constant 0 : index
    %48 = vector.load %arg5[%c0_18, %c0_19] : memref<8x72xf32, #tpu.memory_space<vmem>>, vector<8x72xf32>
    %c0_20 = arith.constant 0 : index
    %c0_21 = arith.constant 0 : index
    %49 = vector.load %arg6[%c0_20, %c0_21] : memref<8x1xf32, #tpu.memory_space<vmem>>, vector<8x1xf32>
    %c0_22 = arith.constant 0 : index
    %c0_23 = arith.constant 0 : index
    %50 = vector.load %arg7[%c0_22, %c0_23] : memref<8x1xf32, #tpu.memory_space<vmem>>, vector<8x1xf32>
    %c0_24 = arith.constant 0 : index
    %c0_25 = arith.constant 0 : index
    %51 = vector.load %arg8[%c0_24, %c0_25] : memref<8x1xf32, #tpu.memory_space<vmem>>, vector<8x1xf32>
    %c0_26 = arith.constant 0 : index
    %c0_27 = arith.constant 0 : index
    %52 = vector.load %arg10[%c0_26, %c0_27] : memref<1x512xf32, #tpu.memory_space<vmem>>, vector<1x512xf32>
    %c511_i32_28 = arith.constant 511 : i32
    %53 = tpu.dynamic_rotate %47 by %c511_i32_28 dim 1 : vector<8x512xf32>, i32 -> vector<8x512xf32>
    %c510_i32_29 = arith.constant 510 : i32
    %54 = tpu.dynamic_rotate %47 by %c510_i32_29 dim 1 : vector<8x512xf32>, i32 -> vector<8x512xf32>
    %c496_i32_30 = arith.constant 496 : i32
    %55 = tpu.dynamic_rotate %47 by %c496_i32_30 dim 1 : vector<8x512xf32>, i32 -> vector<8x512xf32>
    %c495_i32_31 = arith.constant 495 : i32
    %56 = tpu.dynamic_rotate %47 by %c495_i32_31 dim 1 : vector<8x512xf32>, i32 -> vector<8x512xf32>
    %c494_i32_32 = arith.constant 494 : i32
    %57 = tpu.dynamic_rotate %47 by %c494_i32_32 dim 1 : vector<8x512xf32>, i32 -> vector<8x512xf32>
    %c480_i32_33 = arith.constant 480 : i32
    %58 = tpu.dynamic_rotate %47 by %c480_i32_33 dim 1 : vector<8x512xf32>, i32 -> vector<8x512xf32>
    %c479_i32_34 = arith.constant 479 : i32
    %59 = tpu.dynamic_rotate %47 by %c479_i32_34 dim 1 : vector<8x512xf32>, i32 -> vector<8x512xf32>
    %c478_i32_35 = arith.constant 478 : i32
    %60 = tpu.dynamic_rotate %47 by %c478_i32_35 dim 1 : vector<8x512xf32>, i32 -> vector<8x512xf32>
    %61 = tpu.concatenate %47, %53, %54, %55, %56, %57, %58, %59, %60 in 0 : vector<8x512xf32>, vector<8x512xf32>, vector<8x512xf32>, vector<8x512xf32>, vector<8x512xf32>, vector<8x512xf32>, vector<8x512xf32>, vector<8x512xf32>, vector<8x512xf32> -> vector<72x512xf32>
    %cst_36 = arith.constant dense<0.000000e+00> : vector<8x512xf32>
    %62 = tpu.matmul %48, %61, %cst_36 {dimension_numbers = #tpu.dot_dimension_numbers<[1], [0], [0], [1], [0, 0, 1, 1], [], []>} : vector<8x72xf32>, vector<72x512xf32>, vector<8x512xf32> -> vector<8x512xf32>
    %63 = vector.broadcast %49 : vector<8x1xf32> to vector<8x512xf32>
    %64 = arith.addf %62, %63 : vector<8x512xf32>
    %cst_37 = arith.constant 0.000000e+00 : f32
    %65 = vector.broadcast %cst_37 : f32 to vector<8x512xf32>
    %66 = arith.maximumf %64, %65 : vector<8x512xf32>
    %67 = vector.broadcast %52 : vector<1x512xf32> to vector<8x512xf32>
    %68 = arith.mulf %66, %67 : vector<8x512xf32>
    %cst_38 = arith.constant dense<0.000000e+00> : vector<8xf32>
    %69 = vector.multi_reduction <add>, %68, %cst_38 [1] : vector<8x512xf32> to vector<8xf32>
    %70 = vector.shape_cast %69 : vector<8xf32> to vector<8x1xf32>
    %71 = arith.mulf %68, %66 : vector<8x512xf32>
    %cst_39 = arith.constant dense<0.000000e+00> : vector<8xf32>
    %72 = vector.multi_reduction <add>, %71, %cst_39 [1] : vector<8x512xf32> to vector<8xf32>
    %73 = vector.shape_cast %72 : vector<8xf32> to vector<8x1xf32>
    %cst_40 = arith.constant 0.00347222225 : f32
    %74 = vector.broadcast %cst_40 : f32 to vector<8x1xf32>
    %75 = arith.mulf %70, %74 : vector<8x1xf32>
    %cst_41 = arith.constant 0.00347222225 : f32
    %76 = vector.broadcast %cst_41 : f32 to vector<8x1xf32>
    %77 = arith.mulf %73, %76 : vector<8x1xf32>
    %78 = arith.mulf %75, %75 : vector<8x1xf32>
    %79 = arith.subf %77, %78 : vector<8x1xf32>
    %cst_42 = arith.constant 9.99999974E-6 : f32
    %80 = vector.broadcast %cst_42 : f32 to vector<8x1xf32>
    %81 = arith.addf %79, %80 : vector<8x1xf32>
    %82 = math.rsqrt %81 : vector<8x1xf32>
    %83 = arith.mulf %82, %50 : vector<8x1xf32>
    %84 = vector.broadcast %75 : vector<8x1xf32> to vector<8x512xf32>
    %85 = arith.subf %66, %84 : vector<8x512xf32>
    %86 = vector.broadcast %83 : vector<8x1xf32> to vector<8x512xf32>
    %87 = arith.mulf %85, %86 : vector<8x512xf32>
    %88 = vector.broadcast %51 : vector<8x1xf32> to vector<8x512xf32>
    %89 = arith.addf %87, %88 : vector<8x512xf32>
    %c0_43 = arith.constant 0 : index
    %c0_44 = arith.constant 0 : index
    %90 = vector.load %arg11[%c0_43, %c0_44] : memref<256x144xf32, #tpu.memory_space<vmem>>, vector<256x144xf32>
    %91 = vector.extract_strided_slice %89 {offsets = [0, 0], sizes = [8, 256], strides = [1, 1]} : vector<8x512xf32> to vector<8x256xf32>
    %cst_45 = arith.constant dense<0.000000e+00> : vector<8x144xf32>
    %92 = tpu.matmul %91, %90, %cst_45 {dimension_numbers = #tpu.dot_dimension_numbers<[1], [0], [0], [1], [0, 0, 1, 1], [], []>} : vector<8x256xf32>, vector<256x144xf32>, vector<8x144xf32> -> vector<8x144xf32>
    %c0_46 = arith.constant 0 : index
    %c0_47 = arith.constant 0 : index
    %93 = vector.load %arg12[%c0_46, %c0_47] : memref<16x144xf32, #tpu.memory_space<vmem>>, vector<8x144xf32>
    tpu.vector_store %arg12[%c0_46, %c0_47], %92 {strides = array<i32>} : memref<16x144xf32, #tpu.memory_space<vmem>>, vector<8x144xf32>,
    %94 = vector.extract_strided_slice %89 {offsets = [0, 256], sizes = [8, 256], strides = [1, 1]} : vector<8x512xf32> to vector<8x256xf32>
    %cst_48 = arith.constant dense<0.000000e+00> : vector<8x144xf32>
    %95 = tpu.matmul %94, %90, %cst_48 {dimension_numbers = #tpu.dot_dimension_numbers<[1], [0], [0], [1], [0, 0, 1, 1], [], []>} : vector<8x256xf32>, vector<256x144xf32>, vector<8x144xf32> -> vector<8x144xf32>
    %c8 = arith.constant 8 : index
    %c0_49 = arith.constant 0 : index
    %96 = vector.load %arg12[%c8, %c0_49] : memref<16x144xf32, #tpu.memory_space<vmem>>, vector<8x144xf32>
    tpu.vector_store %arg12[%c8, %c0_49], %95 {strides = array<i32>} : memref<16x144xf32, #tpu.memory_space<vmem>>, vector<8x144xf32>,
    return
  }
}

</mosaic_0001>

<llo_original>
// kernel: block_forward.1
$region0: #{block_forward.1}
  #allocation0 [shape = 'u32[]', space=smem, size = 0x4, offset = 0x4, fixed_abs, tag = 'smem constant byte address 0x4 - core index']
  #allocation1 [shape = 'u32[144,128]{1,0:T(1,128)}', space=vmem, size = 0x12000, scoped, tag = 'internal scratch']
  %s0 = inlined_call_operand.vmem [shape: f32[2,4,256], index: 0, kind: input, shape index: {}]
  %s1 = inlined_call_operand.vmem [shape: f32[8,36], index: 1, kind: input, shape index: {}]
  %s2 = inlined_call_operand.vmem [shape: f32[8,1], index: 2, kind: input, shape index: {}]
  %s3 = inlined_call_operand.vmem [shape: f32[8,1], index: 3, kind: input, shape index: {}]
  %s4 = inlined_call_operand.vmem [shape: f32[8,1], index: 4, kind: input, shape index: {}]
  %s5 = inlined_call_operand.vmem [shape: f32[8,72], index: 5, kind: input, shape index: {}]
  %s6 = inlined_call_operand.vmem [shape: f32[8,1], index: 6, kind: input, shape index: {}]
  %s7 = inlined_call_operand.vmem [shape: f32[8,1], index: 7, kind: input, shape index: {}]
  %s8 = inlined_call_operand.vmem [shape: f32[8,1], index: 8, kind: input, shape index: {}]
  %s9 = inlined_call_operand.vmem [shape: f32[1,512], index: 9, kind: input, shape index: {}]
  %s10 = inlined_call_operand.vmem [shape: f32[1,512], index: 10, kind: input, shape index: {}]
  %s11 = inlined_call_operand.hbm [shape: f32[256,144], index: 11, kind: input, shape index: {}]
  %s12 = inlined_call_operand.vmem [shape: f32[16,144], index: 12, kind: output, shape index: {}]
  %s13 = sld [smem:[#allocation0]]
  $region62: #{block_forward.1} parent=0
    _
  %s15 = ssub.s32 1, %s13
  %s16 = scalar_select 0, %s15, %s13
  $region1: #{block_forward.1} parent=0
    #allocation2 [shape = 'u8[262144]{0}', space=vmem, size = 0x40000, scoped, tag = 'input window, operand 11, single buffered']
    #allocation3 [shape = 's32[1]{0}', space=sflag, size = 0x4, scoped, tag = 'scoped memory for block_forward.1']
    %17 = vsyncpa [#allocation3], 0
    // Predicated region
    $region2: #{block_forward.1} parent=1 // pred_check
      _
    $region3: #{block_forward.1} parent=1 // pred_check_branch
      %19 = sbr.rel (0) target = $region5
    $region4: #{block_forward.1} parent=1 // pred_region
      _
    $region5: #{block_forward.1} parent=1 // pred_fallthru
      _
    // Predicated region
    $region6: #{block_forward.1} parent=1 // pred_check
      _
    $region7: #{block_forward.1} parent=1 // pred_check_branch
      %21 = sbr.rel (0) target = $region9
    $region8: #{block_forward.1} parent=1 // pred_region
      _
    $region9: #{block_forward.1} parent=1 // pred_fallthru
      _
    // Predicated region
    $region10: #{block_forward.1} parent=1 // pred_check
      _
    $region11: #{block_forward.1} parent=1 // pred_check_branch
      %23 = sbr.rel (0) target = $region13
    $region12: #{block_forward.1} parent=1 // pred_region
      _
    $region13: #{block_forward.1} parent=1 // pred_fallthru
      _
    // Predicated region
    $region14: #{block_forward.1} parent=1 // pred_check
      _
    $region15: #{block_forward.1} parent=1 // pred_check_branch
      %25 = sbr.rel (0) target = $region17
    $region16: #{block_forward.1} parent=1 // pred_region
      _
    $region17: #{block_forward.1} parent=1 // pred_fallthru
      _
    // Predicated region
    $region18: #{block_forward.1} parent=1 // pred_check
      _
    $region19: #{block_forward.1} parent=1 // pred_check_branch
      %27 = sbr.rel (0) target = $region21
    $region20: #{block_forward.1} parent=1 // pred_region
      _
    $region21: #{block_forward.1} parent=1 // pred_fallthru
      _
    // Predicated region
    $region22: #{block_forward.1} parent=1 // pred_check
      _
    $region23: #{block_forward.1} parent=1 // pred_check_branch
      %29 = sbr.rel (0) target = $region25
    $region24: #{block_forward.1} parent=1 // pred_region
      _
    $region25: #{block_forward.1} parent=1 // pred_fallthru
      _
    // Predicated region
    $region26: #{block_forward.1} parent=1 // pred_check
      _
    $region27: #{block_forward.1} parent=1 // pred_check_branch
      %31 = sbr.rel (0) target = $region29
    $region28: #{block_forward.1} parent=1 // pred_region
      _
    $region29: #{block_forward.1} parent=1 // pred_fallthru
      _
    // Predicated region
    $region30: #{block_forward.1} parent=1 // pred_check
      _
    $region31: #{block_forward.1} parent=1 // pred_check_branch
      %33 = sbr.rel (0) target = $region33
    $region32: #{block_forward.1} parent=1 // pred_region
      _
    $region33: #{block_forward.1} parent=1 // pred_fallthru
      _
    // Predicated region
    $region34: #{block_forward.1} parent=1 // pred_check
      _
    $region35: #{block_forward.1} parent=1 // pred_check_branch
      %35 = sbr.rel (0) target = $region37
    $region36: #{block_forward.1} parent=1 // pred_region
      _
    $region37: #{block_forward.1} parent=1 // pred_fallthru
      _
    // Predicated region
    $region38: #{block_forward.1} parent=1 // pred_check
      _
    $region39: #{block_forward.1} parent=1 // pred_check_branch
      %37 = sbr.rel (0) target = $region41
    $region40: #{block_forward.1} parent=1 // pred_region
      _
    $region41: #{block_forward.1} parent=1 // pred_fallthru
      _
    // Predicated region
    $region42: #{block_forward.1} parent=1 // pred_check
      _
    $region43: #{block_forward.1} parent=1 // pred_check_branch
      %39 = sbr.rel (0) target = $region45
    $region44: #{block_forward.1} parent=1 // pred_region
      _
    $region45: #{block_forward.1} parent=1 // pred_fallthru
      _
    // Predicated region
    $region46: #{block_forward.1} parent=1 // pred_check
      _
    $region47: #{block_forward.1} parent=1 // pred_check_branch
      %41 = sbr.rel (0) target = $region49
    $region48: #{block_forward.1} parent=1 // pred_region
      %s43 = ssub.s32 8192, 8192
      %44 = vsyncadd [#allocation3], %s43
      %s45 = sshll.u32 [#allocation2], 4
      %s46 = int_to_ptr.vmem [resolvable:$true] %s45
      %51 = dma.hbm_to_vmem [thread:$0]  %s11, 8192, %s46, [#allocation3], 256, 256, 16
    $region49: #{block_forward.1} parent=1 // pred_fallthru
      _
    // Predicated region
    $region50: #{block_forward.1} parent=1 // pred_check
      _
    $region51: #{block_forward.1} parent=1 // pred_check_branch
      %53 = sbr.rel (0) target = $region53
    $region52: #{block_forward.1} parent=1 // pred_region
      %54 = dma.done [#allocation3], 8192
    $region53: #{block_forward.1} parent=1 // pred_fallthru
      _
    %v55 = vld [vmem:[%s0] sm:$0xff]
    %v56 = vld [vmem:[%s0 + $0x8] sm:$0xff]
    %v58 = vcombine.high %v55, %v55
    %v61 = vcombine.high %v56, %v56
    %v63 = vld [vmem:[%s1] sm:$0xff]
    %v64 = vld [vmem:[%s2] sm:$0xff]
    %v65 = vld [vmem:[%s3] sm:$0xff]
    %v66 = vld [vmem:[%s4] sm:$0xff]
    %v67 = vld [vmem:[%s9] sm:$0xf]
    %68 = vrot.lane.b32.xlu0 %v55, 127
    %v69 = vpop.permute.xlu0 %68
    %70 = vrot.lane.b32.xlu0 %v58, 127
    %v71 = vpop.permute.xlu0 %70
    %72 = vrot.lane.b32.xlu0 %v56, 127
    %v73 = vpop.permute.xlu0 %72
    %74 = vrot.lane.b32.xlu0 %v61, 127
    %v75 = vpop.permute.xlu0 %74
    %v76 = vlaneseq
    %v77 = vand.u32 %v76, 127
    %vm78 = vcmp.lt.s32.totalorder %v77, 127
    %v79 = vsel %vm78, %v73, %v75
    %v80 = vsel %vm78, %v71, %v73
    %v81 = vsel %vm78, %v69, %v71
    %v82 = vsel %vm78, %v75, %v69
    %83 = vrot.lane.b32.xlu0 %v55, 126
    %v84 = vpop.permute.xlu0 %83
    %85 = vrot.lane.b32.xlu0 %v58, 126
    %v86 = vpop.permute.xlu0 %85
    %87 = vrot.lane.b32.xlu0 %v56, 126
    %v88 = vpop.permute.xlu0 %87
    %89 = vrot.lane.b32.xlu0 %v61, 126
    %v90 = vpop.permute.xlu0 %89
    %vm91 = vcmp.lt.s32.totalorder %v77, 126
    %v92 = vsel %vm91, %v88, %v90
    %v93 = vsel %vm91, %v86, %v88
    %v94 = vsel %vm91, %v84, %v86
    %v95 = vsel %vm91, %v90, %v84
    %96 = vrot.lane.b32.xlu0 %v55, 112
    %v97 = vpop.permute.xlu0 %96
    %98 = vrot.lane.b32.xlu0 %v58, 112
    %v99 = vpop.permute.xlu0 %98
    %100 = vrot.lane.b32.xlu0 %v56, 112
    %v101 = vpop.permute.xlu0 %100
    %102 = vrot.lane.b32.xlu0 %v61, 112
    %v103 = vpop.permute.xlu0 %102
    %vm104 = vcmp.lt.s32.totalorder %v77, 112
    %v105 = vsel %vm104, %v101, %v103
    %v106 = vsel %vm104, %v99, %v101
    %v107 = vsel %vm104, %v97, %v99
    %v108 = vsel %vm104, %v103, %v97
    %109 = vrot.lane.b32.xlu0 %v55, 111
    %v110 = vpop.permute.xlu0 %109
    %111 = vrot.lane.b32.xlu0 %v58, 111
    %v112 = vpop.permute.xlu0 %111
    %113 = vrot.lane.b32.xlu0 %v56, 111
    %v114 = vpop.permute.xlu0 %113
    %115 = vrot.lane.b32.xlu0 %v61, 111
    %v116 = vpop.permute.xlu0 %115
    %vm117 = vcmp.lt.s32.totalorder %v77, 111
    %v118 = vsel %vm117, %v114, %v116
    %v119 = vsel %vm117, %v112, %v114
    %v120 = vsel %vm117, %v110, %v112
    %v121 = vsel %vm117, %v116, %v110
    %122 = vrot.lane.b32.xlu0 %v55, 110
    %v123 = vpop.permute.xlu0 %122
    %124 = vrot.lane.b32.xlu0 %v58, 110
    %v125 = vpop.permute.xlu0 %124
    %126 = vrot.lane.b32.xlu0 %v56, 110
    %v127 = vpop.permute.xlu0 %126
    %128 = vrot.lane.b32.xlu0 %v61, 110
    %v129 = vpop.permute.xlu0 %128
    %vm130 = vcmp.lt.s32.totalorder %v77, 110
    %v131 = vsel %vm130, %v127, %v129
    %v132 = vsel %vm130, %v125, %v127
    %v133 = vsel %vm130, %v123, %v125
    %v134 = vsel %vm130, %v129, %v123
    %135 = vrot.lane.b32.xlu0 %v55, 96
    %v136 = vpop.permute.xlu0 %135
    %137 = vrot.lane.b32.xlu0 %v58, 96
    %v138 = vpop.permute.xlu0 %137
    %139 = vrot.lane.b32.xlu0 %v56, 96
    %v140 = vpop.permute.xlu0 %139
    %141 = vrot.lane.b32.xlu0 %v61, 96
    %v142 = vpop.permute.xlu0 %141
    %vm143 = vcmp.lt.s32.totalorder %v77, 96
    %v144 = vsel %vm143, %v140, %v142
    %v145 = vsel %vm143, %v138, %v140
    %v146 = vsel %vm143, %v136, %v138
    %v147 = vsel %vm143, %v142, %v136
    %148 = vrot.lane.b32.xlu0 %v55, 95
    %v149 = vpop.permute.xlu0 %148
    %150 = vrot.lane.b32.xlu0 %v58, 95
    %v151 = vpop.permute.xlu0 %150
    %152 = vrot.lane.b32.xlu0 %v56, 95
    %v153 = vpop.permute.xlu0 %152
    %154 = vrot.lane.b32.xlu0 %v61, 95
    %v155 = vpop.permute.xlu0 %154
    %vm156 = vcmp.lt.s32.totalorder %v77, 95
    %v157 = vsel %vm156, %v153, %v155
    %v158 = vsel %vm156, %v151, %v153
    %v159 = vsel %vm156, %v149, %v151
    %v160 = vsel %vm156, %v155, %v149
    %161 = vrot.lane.b32.xlu0 %v55, 94
    %v162 = vpop.permute.xlu0 %161
    %163 = vrot.lane.b32.xlu0 %v58, 94
    %v164 = vpop.permute.xlu0 %163
    %165 = vrot.lane.b32.xlu0 %v56, 94
    %v166 = vpop.permute.xlu0 %165
    %167 = vrot.lane.b32.xlu0 %v61, 94
    %v168 = vpop.permute.xlu0 %167
    %vm169 = vcmp.lt.s32.totalorder %v77, 94
    %v170 = vsel %vm169, %v166, %v168
    %v171 = vsel %vm169, %v164, %v166
    %v172 = vsel %vm169, %v162, %v164
    %v173 = vsel %vm169, %v168, %v162
    %v178 = vrot.slane %v81, 4
    %v179 = vrot.slane %v80, 4
    %v180 = vrot.slane %v79, 4
    %v181 = vrot.slane %v82, 4
    %v190 = vrot.slane %v107, 4
    %v191 = vrot.slane %v106, 4
    %v192 = vrot.slane %v105, 4
    %v193 = vrot.slane %v108, 4
    %v202 = vrot.slane %v133, 4
    %v203 = vrot.slane %v132, 4
    %v204 = vrot.slane %v131, 4
    %v205 = vrot.slane %v134, 4
    %v214 = vrot.slane %v159, 4
    %v215 = vrot.slane %v158, 4
    %v216 = vrot.slane %v157, 4
    %v217 = vrot.slane %v160, 4
    %vm222 = vcmask 1043456
    %v223 = vsel %vm222, %v55, %v178
    %v224 = vsel %vm222, %v58, %v179
    %v225 = vsel %vm222, %v56, %v180
    %v226 = vsel %vm222, %v61, %v181
    %v227 = vsel %vm222, %v94, %v190
    %v228 = vsel %vm222, %v93, %v191
    %v229 = vsel %vm222, %v92, %v192
    %v230 = vsel %vm222, %v95, %v193
    %v231 = vsel %vm222, %v120, %v202
    %v232 = vsel %vm222, %v119, %v203
    %v233 = vsel %vm222, %v118, %v204
    %v234 = vsel %vm222, %v121, %v205
    %v235 = vsel %vm222, %v146, %v214
    %v236 = vsel %vm222, %v145, %v215
    %v237 = vsel %vm222, %v144, %v216
    %v238 = vsel %vm222, %v147, %v217
    %240 = vset.pattern.permute.xlu0 0
    %241 = vperm.xlu0 %240, %v64
    %v242 = vpop.permute.xlu0 %241
    %vm244 = vcmask 293888
    %v246 = vsel %vm244, %v63, 0
    %v249 = vsel %vm222, %v172, 0
    %v252 = vsel %vm222, %v171, 0
    %v255 = vsel %vm222, %v170, 0
    %v258 = vsel %vm222, %v173, 0
    %260 = vmatprep.subr.mxu0 %v224
    %261 = vmatpush1.msra.mxu0 %v223
    %262 = vmatprep.subr.mxu0 %v228
    %263 = vmatpush1.msra.mxu0 %v227
    %264 = vmatprep.subr.mxu0 %v232
    %265 = vmatpush1.msra.mxu0 %v231
    %266 = vmatprep.subr.mxu0 %v236
    %267 = vmatpush1.msra.mxu0 %v235
    %268 = vmatprep.subr.mxu0 %v252
    %269 = vmatpush1.msra.mxu0 %v249
    %270 = vmatprep.subr.mxu0 0.0
    %271 = vmatpush1.msra.mxu0 0.0
    %272 = vmatprep.subr.mxu0 0.0
    %273 = vmatpush1.msra.mxu0 0.0
    %274 = vmatprep.subr.mxu0 0.0
    %275 = vmatpush1.msra.mxu0 0.0
    %276 = vmatprep.subr.mxu0 0.0
    %277 = vmatpush1.msra.mxu0 0.0
    %278 = vmatprep.subr.mxu0 0.0
    %279 = vmatpush1.msra.mxu0 0.0
    %280 = vmatprep.subr.mxu0 0.0
    %281 = vmatpush1.msra.mxu0 0.0
    %282 = vmatprep.subr.mxu0 0.0
    %283 = vmatpush1.msra.mxu0 0.0
    %284 = vmatprep.subr.mxu0 0.0
    %285 = vmatpush1.msra.mxu0 0.0
    %286 = vmatprep.subr.mxu0 0.0
    %287 = vmatpush1.msra.mxu0 0.0
    %288 = vmatprep.subr.mxu0 0.0
    %289 = vmatpush1.msra.mxu0 0.0
    %290 = vmatprep.subr.mxu0 0.0
    %291 = vmatpush1.msra.mxu0 0.0
    %292 = vmatprep.subr.mxu0 0.0
    %293 = vmatpush1.msra.mxu0 0.0
    %294 = vmatprep.subr.mxu0 0.0
    %295 = vmatpush1.msra.mxu0 0.0
    %296 = vmatprep.subr.mxu0 0.0
    %297 = vmatpush1.msra.mxu0 0.0
    %298 = vmatprep.subr.mxu0 0.0
    %299 = vmatpush1.msra.mxu0 0.0
    %300 = vmatprep.subr.mxu0 0.0
    %301 = vmatpush1.msra.mxu0 0.0
    %302 = vmatprep.subr.mxu0 0.0
    %303 = vmatpush1.msra.mxu0 0.0
    %304 = vmatprep.subr.mxu0 0.0
    %305 = vmatpush1.msra.mxu0 0.0
    %306 = vmatprep.subr.mxu0 0.0
    %307 = vmatpush1.msra.mxu0 0.0
    %308 = vmatprep.subr.mxu0 0.0
    %309 = vmatpush1.msra.mxu0 0.0
    %310 = vmatprep.subr.mxu0 0.0
    %311 = vmatpush1.msra.mxu0 0.0
    %312 = vmatprep.subr.mxu0 0.0
    %313 = vmatpush1.msra.mxu0 0.0
    %314 = vmatprep.subr.mxu0 0.0
    %315 = vmatpush1.msra.mxu0 0.0
    %316 = vmatprep.subr.mxu0 0.0
    %317 = vmatpush1.msra.mxu0 0.0
    %318 = vmatprep.subr.mxu0 0.0
    %319 = vmatpush1.msra.mxu0 0.0
    %320 = vmatprep.subr.mxu0 0.0
    %321 = vmatpush1.msra.mxu0 0.0
    %322 = vmatprep.subr.mxu0 0.0
    %323 = vmatpush1.msra.mxu0 0.0
    %324 = vmatprep.mubr.f32.mxu0 0.0
    %325 = vmatmul.mubr.f32.gmra.mrb[0].mxu0 %v246
    %v326 = vpop.f32.mrb[0].mxu0
    %v327 = vadd.f32 %v242, %v326
    %v328 = vpop.f32.mrb[0].mxu0
    %v329 = vadd.f32 %v242, %v328
    %330 = vdwg.mxu0
    %331 = vmatprep.subr.mxu0 %v226
    %332 = vmatpush1.msra.mxu0 %v225
    %333 = vmatprep.subr.mxu0 %v230
    %334 = vmatpush1.msra.mxu0 %v229
    %335 = vmatprep.subr.mxu0 %v234
    %336 = vmatpush1.msra.mxu0 %v233
    %337 = vmatprep.subr.mxu0 %v238
    %338 = vmatpush1.msra.mxu0 %v237
    %339 = vmatprep.subr.mxu0 %v258
    %340 = vmatpush1.msra.mxu0 %v255
    %341 = vmatprep.subr.mxu0 0.0
    %342 = vmatpush1.msra.mxu0 0.0
    %343 = vmatprep.subr.mxu0 0.0
    %344 = vmatpush1.msra.mxu0 0.0
    %345 = vmatprep.subr.mxu0 0.0
    %346 = vmatpush1.msra.mxu0 0.0
    %347 = vmatprep.subr.mxu0 0.0
    %348 = vmatpush1.msra.mxu0 0.0
    %349 = vmatprep.subr.mxu0 0.0
    %350 = vmatpush1.msra.mxu0 0.0
    %351 = vmatprep.subr.mxu0 0.0
    %352 = vmatpush1.msra.mxu0 0.0
    %353 = vmatprep.subr.mxu0 0.0
    %354 = vmatpush1.msra.mxu0 0.0
    %355 = vmatprep.subr.mxu0 0.0
    %356 = vmatpush1.msra.mxu0 0.0
    %357 = vmatprep.subr.mxu0 0.0
    %358 = vmatpush1.msra.mxu0 0.0
    %359 = vmatprep.subr.mxu0 0.0
    %360 = vmatpush1.msra.mxu0 0.0
    %361 = vmatprep.subr.mxu0 0.0
    %362 = vmatpush1.msra.mxu0 0.0
    %363 = vmatprep.subr.mxu0 0.0
    %364 = vmatpush1.msra.mxu0 0.0
    %365 = vmatprep.subr.mxu0 0.0
    %366 = vmatpush1.msra.mxu0 0.0
    %367 = vmatprep.subr.mxu0 0.0
    %368 = vmatpush1.msra.mxu0 0.0
    %369 = vmatprep.subr.mxu0 0.0
    %370 = vmatpush1.msra.mxu0 0.0
    %371 = vmatprep.subr.mxu0 0.0
    %372 = vmatpush1.msra.mxu0 0.0
    %373 = vmatprep.subr.mxu0 0.0
    %374 = vmatpush1.msra.mxu0 0.0
    %375 = vmatprep.subr.mxu0 0.0
    %376 = vmatpush1.msra.mxu0 0.0
    %377 = vmatprep.subr.mxu0 0.0
    %378 = vmatpush1.msra.mxu0 0.0
    %379 = vmatprep.subr.mxu0 0.0
    %380 = vmatpush1.msra.mxu0 0.0
    %381 = vmatprep.subr.mxu0 0.0
    %382 = vmatpush1.msra.mxu0 0.0
    %383 = vmatprep.subr.mxu0 0.0
    %384 = vmatpush1.msra.mxu0 0.0
    %385 = vmatprep.subr.mxu0 0.0
    %386 = vmatpush1.msra.mxu0 0.0
    %387 = vmatprep.subr.mxu0 0.0
    %388 = vmatpush1.msra.mxu0 0.0
    %389 = vmatprep.subr.mxu0 0.0
    %390 = vmatpush1.msra.mxu0 0.0
    %391 = vmatprep.subr.mxu0 0.0
    %392 = vmatpush1.msra.mxu0 0.0
    %393 = vmatprep.subr.mxu0 0.0
    %394 = vmatpush1.msra.mxu0 0.0
    %395 = vmatprep.mubr.f32.mxu0 0.0
    %396 = vmatmul.mubr.f32.gmra.mrb[0].mxu0 %v246
    %v397 = vpop.f32.mrb[0].mxu0
    %v398 = vadd.f32 %v242, %v397
    %v399 = vpop.f32.mrb[0].mxu0
    %v400 = vadd.f32 %v242, %v399
    %401 = vdwg.mxu0
    %v402 = vmax.f32 %v327, 0.0
    %v403 = vmax.f32 %v329, 0.0
    %v404 = vmax.f32 %v398, 0.0
    %v405 = vmax.f32 %v400, 0.0
    %v407 = vlaneseq
    %v408 = vshrl.u32 %v407, 7
    %v409 = vsub.s32 0, %v408
    %v410 = vrot.slane %v67, %v409
    %v411 = vlaneseq
    %v412 = vshrl.u32 %v411, 7
    %v413 = vsub.s32 1, %v412
    %v414 = vrot.slane %v67, %v413
    %v415 = vlaneseq
    %v416 = vshrl.u32 %v415, 7
    %v417 = vsub.s32 2, %v416
    %v418 = vrot.slane %v67, %v417
    %v419 = vlaneseq
    %v420 = vshrl.u32 %v419, 7
    %v421 = vsub.s32 3, %v420
    %v422 = vrot.slane %v67, %v421
    %v427 = vmul.f32 %v402, %v410
    %v428 = vmul.f32 %v403, %v414
    %v429 = vmul.f32 %v404, %v418
    %v430 = vmul.f32 %v405, %v422
    %v431 = vadd.f32 %v427, %v428
    %v432 = vadd.f32 %v431, %v429
    %v433 = vadd.f32 %v432, %v430
    %434 = vadd.xlane.f32.xlu0 %v433
    %v435 = vpop.xlane.xlu0 %434
    %v436 = vmul.f32 %v427, %v402
    %v437 = vmul.f32 %v428, %v403
    %v438 = vmul.f32 %v429, %v404
    %v439 = vmul.f32 %v430, %v405
    %v440 = vadd.f32 %v436, %v437
    %v441 = vadd.f32 %v440, %v438
    %v442 = vadd.f32 %v441, %v439
    %443 = vadd.xlane.f32.xlu0 %v442
    %v444 = vpop.xlane.xlu0 %443
    %v445 = vmul.f32 %v435, 0.0025510204
    %v446 = vmul.f32 %v444, 0.0025510204
    %v447 = vmul.f32 %v445, %v445
    %v448 = vsub.f32 %v446, %v447
    %v449 = vadd.f32 %v448, 1e-05
    %v450 = vrsqrt.pop %v449
    %v451 = vmul.f32 %v450, %v65
    %v452 = vsub.f32 %v402, %v445
    %v453 = vsub.f32 %v403, %v445
    %v454 = vsub.f32 %v404, %v445
    %v455 = vsub.f32 %v405, %v445
    %457 = vset.pattern.permute.xlu0 0
    %458 = vperm.xlu0 %457, %v451
    %v459 = vpop.permute.xlu0 %458
    %v461 = vmul.f32 %v452, %v459
    %v462 = vmul.f32 %v453, %v459
    %v463 = vmul.f32 %v454, %v459
    %v464 = vmul.f32 %v455, %v459
    %466 = vset.pattern.permute.xlu0 0
    %467 = vperm.xlu0 %466, %v66
    %v468 = vpop.permute.xlu0 %467
    %v470 = vadd.f32 %v461, %v468
    %v471 = vadd.f32 %v462, %v468
    %v472 = vadd.f32 %v463, %v468
    %v473 = vadd.f32 %v464, %v468
    %v474 = vld [vmem:[%s5] sm:$0xff]
    %v475 = vld [vmem:[%s6] sm:$0xff]
    %v476 = vld [vmem:[%s7] sm:$0xff]
    %v477 = vld [vmem:[%s8] sm:$0xff]
    %v478 = vld [vmem:[%s10] sm:$0xf]
    %479 = vrot.lane.b32.xlu0 %v470, 127
    %v480 = vpop.permute.xlu0 %479
    %481 = vrot.lane.b32.xlu0 %v471, 127
    %v482 = vpop.permute.xlu0 %481
    %483 = vrot.lane.b32.xlu0 %v472, 127
    %v484 = vpop.permute.xlu0 %483
    %485 = vrot.lane.b32.xlu0 %v473, 127
    %v486 = vpop.permute.xlu0 %485
    %v487 = vsel %vm78, %v484, %v486
    %v488 = vsel %vm78, %v482, %v484
    %v489 = vsel %vm78, %v480, %v482
    %v490 = vsel %vm78, %v486, %v480
    %491 = vrot.lane.b32.xlu0 %v470, 126
    %v492 = vpop.permute.xlu0 %491
    %493 = vrot.lane.b32.xlu0 %v471, 126
    %v494 = vpop.permute.xlu0 %493
    %495 = vrot.lane.b32.xlu0 %v472, 126
    %v496 = vpop.permute.xlu0 %495
    %497 = vrot.lane.b32.xlu0 %v473, 126
    %v498 = vpop.permute.xlu0 %497
    %v499 = vsel %vm91, %v496, %v498
    %v500 = vsel %vm91, %v494, %v496
    %v501 = vsel %vm91, %v492, %v494
    %v502 = vsel %vm91, %v498, %v492
    %503 = vrot.lane.b32.xlu0 %v470, 112
    %v504 = vpop.permute.xlu0 %503
    %505 = vrot.lane.b32.xlu0 %v471, 112
    %v506 = vpop.permute.xlu0 %505
    %507 = vrot.lane.b32.xlu0 %v472, 112
    %v508 = vpop.permute.xlu0 %507
    %509 = vrot.lane.b32.xlu0 %v473, 112
    %v510 = vpop.permute.xlu0 %509
    %v511 = vsel %vm104, %v508, %v510
    %v512 = vsel %vm104, %v506, %v508
    %v513 = vsel %vm104, %v504, %v506
    %v514 = vsel %vm104, %v510, %v504
    %515 = vrot.lane.b32.xlu0 %v470, 111
    %v516 = vpop.permute.xlu0 %515
    %517 = vrot.lane.b32.xlu0 %v471, 111
    %v518 = vpop.permute.xlu0 %517
    %519 = vrot.lane.b32.xlu0 %v472, 111
    %v520 = vpop.permute.xlu0 %519
    %521 = vrot.lane.b32.xlu0 %v473, 111
    %v522 = vpop.permute.xlu0 %521
    %v523 = vsel %vm117, %v520, %v522
    %v524 = vsel %vm117, %v518, %v520
    %v525 = vsel %vm117, %v516, %v518
    %v526 = vsel %vm117, %v522, %v516
    %527 = vrot.lane.b32.xlu0 %v470, 110
    %v528 = vpop.permute.xlu0 %527
    %529 = vrot.lane.b32.xlu0 %v471, 110
    %v530 = vpop.permute.xlu0 %529
    %531 = vrot.lane.b32.xlu0 %v472, 110
    %v532 = vpop.permute.xlu0 %531
    %533 = vrot.lane.b32.xlu0 %v473, 110
    %v534 = vpop.permute.xlu0 %533
    %v535 = vsel %vm130, %v532, %v534
    %v536 = vsel %vm130, %v530, %v532
    %v537 = vsel %vm130, %v528, %v530
    %v538 = vsel %vm130, %v534, %v528
    %539 = vrot.lane.b32.xlu0 %v470, 96
    %v540 = vpop.permute.xlu0 %539
    %541 = vrot.lane.b32.xlu0 %v471, 96
    %v542 = vpop.permute.xlu0 %541
    %543 = vrot.lane.b32.xlu0 %v472, 96
    %v544 = vpop.permute.xlu0 %543
    %545 = vrot.lane.b32.xlu0 %v473, 96
    %v546 = vpop.permute.xlu0 %545
    %v547 = vsel %vm143, %v544, %v546
    %v548 = vsel %vm143, %v542, %v544
    %v549 = vsel %vm143, %v540, %v542
    %v550 = vsel %vm143, %v546, %v540
    %551 = vrot.lane.b32.xlu0 %v470, 95
    %v552 = vpop.permute.xlu0 %551
    %553 = vrot.lane.b32.xlu0 %v471, 95
    %v554 = vpop.permute.xlu0 %553
    %555 = vrot.lane.b32.xlu0 %v472, 95
    %v556 = vpop.permute.xlu0 %555
    %557 = vrot.lane.b32.xlu0 %v473, 95
    %v558 = vpop.permute.xlu0 %557
    %v559 = vsel %vm156, %v556, %v558
    %v560 = vsel %vm156, %v554, %v556
    %v561 = vsel %vm156, %v552, %v554
    %v562 = vsel %vm156, %v558, %v552
    %563 = vrot.lane.b32.xlu0 %v470, 94
    %v564 = vpop.permute.xlu0 %563
    %565 = vrot.lane.b32.xlu0 %v471, 94
    %v566 = vpop.permute.xlu0 %565
    %567 = vrot.lane.b32.xlu0 %v472, 94
    %v568 = vpop.permute.xlu0 %567
    %569 = vrot.lane.b32.xlu0 %v473, 94
    %v570 = vpop.permute.xlu0 %569
    %v571 = vsel %vm169, %v568, %v570
    %v572 = vsel %vm169, %v566, %v568
    %v573 = vsel %vm169, %v564, %v566
    %v574 = vsel %vm169, %v570, %v564
    %576 = vset.pattern.permute.xlu0 0
    %577 = vperm.xlu0 %576, %v475
    %v578 = vpop.permute.xlu0 %577
    %vm580 = vcmask 588800
    %v582 = vsel %vm580, %v474, 0
    %584 = vmatprep.subr.mxu0 %v471
    %585 = vmatpush1.msra.mxu0 %v470
    %586 = vmatprep.subr.mxu0 %v488
    %587 = vmatpush1.msra.mxu0 %v489
    %588 = vmatprep.subr.mxu0 %v500
    %589 = vmatpush1.msra.mxu0 %v501
    %590 = vmatprep.subr.mxu0 %v512
    %591 = vmatpush1.msra.mxu0 %v513
    %592 = vmatprep.subr.mxu0 %v524
    %593 = vmatpush1.msra.mxu0 %v525
    %594 = vmatprep.subr.mxu0 %v536
    %595 = vmatpush1.msra.mxu0 %v537
    %596 = vmatprep.subr.mxu0 %v548
    %597 = vmatpush1.msra.mxu0 %v549
    %598 = vmatprep.subr.mxu0 %v560
    %599 = vmatpush1.msra.mxu0 %v561
    %600 = vmatprep.subr.mxu0 %v572
    %601 = vmatpush1.msra.mxu0 %v573
    %602 = vmatprep.subr.mxu0 0.0
    %603 = vmatpush1.msra.mxu0 0.0
    %604 = vmatprep.subr.mxu0 0.0
    %605 = vmatpush1.msra.mxu0 0.0
    %606 = vmatprep.subr.mxu0 0.0
    %607 = vmatpush1.msra.mxu0 0.0
    %608 = vmatprep.subr.mxu0 0.0
    %609 = vmatpush1.msra.mxu0 0.0
    %610 = vmatprep.subr.mxu0 0.0
    %611 = vmatpush1.msra.mxu0 0.0
    %612 = vmatprep.subr.mxu0 0.0
    %613 = vmatpush1.msra.mxu0 0.0
    %614 = vmatprep.subr.mxu0 0.0
    %615 = vmatpush1.msra.mxu0 0.0
    %616 = vmatprep.subr.mxu0 0.0
    %617 = vmatpush1.msra.mxu0 0.0
    %618 = vmatprep.subr.mxu0 0.0
    %619 = vmatpush1.msra.mxu0 0.0
    %620 = vmatprep.subr.mxu0 0.0
    %621 = vmatpush1.msra.mxu0 0.0
    %622 = vmatprep.subr.mxu0 0.0
    %623 = vmatpush1.msra.mxu0 0.0
    %624 = vmatprep.subr.mxu0 0.0
    %625 = vmatpush1.msra.mxu0 0.0
    %626 = vmatprep.subr.mxu0 0.0
    %627 = vmatpush1.msra.mxu0 0.0
    %628 = vmatprep.subr.mxu0 0.0
    %629 = vmatpush1.msra.mxu0 0.0
    %630 = vmatprep.subr.mxu0 0.0
    %631 = vmatpush1.msra.mxu0 0.0
    %632 = vmatprep.subr.mxu0 0.0
    %633 = vmatpush1.msra.mxu0 0.0
    %634 = vmatprep.subr.mxu0 0.0
    %635 = vmatpush1.msra.mxu0 0.0
    %636 = vmatprep.subr.mxu0 0.0
    %637 = vmatpush1.msra.mxu0 0.0
    %638 = vmatprep.subr.mxu0 0.0
    %639 = vmatpush1.msra.mxu0 0.0
    %640 = vmatprep.subr.mxu0 0.0
    %641 = vmatpush1.msra.mxu0 0.0
    %642 = vmatprep.subr.mxu0 0.0
    %643 = vmatpush1.msra.mxu0 0.0
    %644 = vmatprep.subr.mxu0 0.0
    %645 = vmatpush1.msra.mxu0 0.0
    %646 = vmatprep.subr.mxu0 0.0
    %647 = vmatpush1.msra.mxu0 0.0
    %648 = vmatprep.mubr.f32.mxu0 0.0
    %649 = vmatmul.mubr.f32.gmra.mrb[0].mxu0 %v582
    %v650 = vpop.f32.mrb[0].mxu0
    %v651 = vadd.f32 %v578, %v650
    %v652 = vpop.f32.mrb[0].mxu0
    %v653 = vadd.f32 %v578, %v652
    %654 = vdwg.mxu0
    %655 = vmatprep.subr.mxu0 %v473
    %656 = vmatpush1.msra.mxu0 %v472
    %657 = vmatprep.subr.mxu0 %v490
    %658 = vmatpush1.msra.mxu0 %v487
    %659 = vmatprep.subr.mxu0 %v502
    %660 = vmatpush1.msra.mxu0 %v499
    %661 = vmatprep.subr.mxu0 %v514
    %662 = vmatpush1.msra.mxu0 %v511
    %663 = vmatprep.subr.mxu0 %v526
    %664 = vmatpush1.msra.mxu0 %v523
    %665 = vmatprep.subr.mxu0 %v538
    %666 = vmatpush1.msra.mxu0 %v535
    %667 = vmatprep.subr.mxu0 %v550
    %668 = vmatpush1.msra.mxu0 %v547
    %669 = vmatprep.subr.mxu0 %v562
    %670 = vmatpush1.msra.mxu0 %v559
    %671 = vmatprep.subr.mxu0 %v574
    %672 = vmatpush1.msra.mxu0 %v571
    %673 = vmatprep.subr.mxu0 0.0
    %674 = vmatpush1.msra.mxu0 0.0
    %675 = vmatprep.subr.mxu0 0.0
    %676 = vmatpush1.msra.mxu0 0.0
    %677 = vmatprep.subr.mxu0 0.0
    %678 = vmatpush1.msra.mxu0 0.0
    %679 = vmatprep.subr.mxu0 0.0
    %680 = vmatpush1.msra.mxu0 0.0
    %681 = vmatprep.subr.mxu0 0.0
    %682 = vmatpush1.msra.mxu0 0.0
    %683 = vmatprep.subr.mxu0 0.0
    %684 = vmatpush1.msra.mxu0 0.0
    %685 = vmatprep.subr.mxu0 0.0
    %686 = vmatpush1.msra.mxu0 0.0
    %687 = vmatprep.subr.mxu0 0.0
    %688 = vmatpush1.msra.mxu0 0.0
    %689 = vmatprep.subr.mxu0 0.0
    %690 = vmatpush1.msra.mxu0 0.0
    %691 = vmatprep.subr.mxu0 0.0
    %692 = vmatpush1.msra.mxu0 0.0
    %693 = vmatprep.subr.mxu0 0.0
    %694 = vmatpush1.msra.mxu0 0.0
    %695 = vmatprep.subr.mxu0 0.0
    %696 = vmatpush1.msra.mxu0 0.0
    %697 = vmatprep.subr.mxu0 0.0
    %698 = vmatpush1.msra.mxu0 0.0
    %699 = vmatprep.subr.mxu0 0.0
    %700 = vmatpush1.msra.mxu0 0.0
    %701 = vmatprep.subr.mxu0 0.0
    %702 = vmatpush1.msra.mxu0 0.0
    %703 = vmatprep.subr.mxu0 0.0
    %704 = vmatpush1.msra.mxu0 0.0
    %705 = vmatprep.subr.mxu0 0.0
    %706 = vmatpush1.msra.mxu0 0.0
    %707 = vmatprep.subr.mxu0 0.0
    %708 = vmatpush1.msra.mxu0 0.0
    %709 = vmatprep.subr.mxu0 0.0
    %710 = vmatpush1.msra.mxu0 0.0
    %711 = vmatprep.subr.mxu0 0.0
    %712 = vmatpush1.msra.mxu0 0.0
    %713 = vmatprep.subr.mxu0 0.0
    %714 = vmatpush1.msra.mxu0 0.0
    %715 = vmatprep.subr.mxu0 0.0
    %716 = vmatpush1.msra.mxu0 0.0
    %717 = vmatprep.subr.mxu0 0.0
    %718 = vmatpush1.msra.mxu0 0.0
    %719 = vmatprep.mubr.f32.mxu0 0.0
    %720 = vmatmul.mubr.f32.gmra.mrb[0].mxu0 %v582
    %v721 = vpop.f32.mrb[0].mxu0
    %v722 = vadd.f32 %v578, %v721
    %v723 = vpop.f32.mrb[0].mxu0
    %v724 = vadd.f32 %v578, %v723
    %725 = vdwg.mxu0
    %v726 = vmax.f32 %v651, 0.0
    %v727 = vmax.f32 %v653, 0.0
    %v728 = vmax.f32 %v722, 0.0
    %v729 = vmax.f32 %v724, 0.0
    %v731 = vlaneseq
    %v732 = vshrl.u32 %v731, 7
    %v733 = vsub.s32 0, %v732
    %v734 = vrot.slane %v478, %v733
    %v735 = vlaneseq
    %v736 = vshrl.u32 %v735, 7
    %v737 = vsub.s32 1, %v736
    %v738 = vrot.slane %v478, %v737
    %v739 = vlaneseq
    %v740 = vshrl.u32 %v739, 7
    %v741 = vsub.s32 2, %v740
    %v742 = vrot.slane %v478, %v741
    %v743 = vlaneseq
    %v744 = vshrl.u32 %v743, 7
    %v745 = vsub.s32 3, %v744
    %v746 = vrot.slane %v478, %v745
    %v751 = vmul.f32 %v726, %v734
    %v752 = vmul.f32 %v727, %v738
    %v753 = vmul.f32 %v728, %v742
    %v754 = vmul.f32 %v729, %v746
    %v755 = vadd.f32 %v751, %v752
    %v756 = vadd.f32 %v755, %v753
    %v757 = vadd.f32 %v756, %v754
    %758 = vadd.xlane.f32.xlu0 %v757
    %v759 = vpop.xlane.xlu0 %758
    %v760 = vmul.f32 %v751, %v726
    %v761 = vmul.f32 %v752, %v727
    %v762 = vmul.f32 %v753, %v728
    %v763 = vmul.f32 %v754, %v729
    %v764 = vadd.f32 %v760, %v761
    %v765 = vadd.f32 %v764, %v762
    %v766 = vadd.f32 %v765, %v763
    %767 = vadd.xlane.f32.xlu0 %v766
    %v768 = vpop.xlane.xlu0 %767
    %v769 = vmul.f32 %v759, 0.0034722222
    %v770 = vmul.f32 %v768, 0.0034722222
    %v771 = vmul.f32 %v769, %v769
    %v772 = vsub.f32 %v770, %v771
    %v773 = vadd.f32 %v772, 1e-05
    %v774 = vrsqrt.pop %v773
    %v775 = vmul.f32 %v774, %v476
    %v776 = vsub.f32 %v726, %v769
    %v777 = vsub.f32 %v727, %v769
    %v778 = vsub.f32 %v728, %v769
    %v779 = vsub.f32 %v729, %v769
    %781 = vset.pattern.permute.xlu0 0
    %782 = vperm.xlu0 %781, %v775
    %v783 = vpop.permute.xlu0 %782
    %v785 = vmul.f32 %v776, %v783
    %v786 = vmul.f32 %v777, %v783
    %v787 = vmul.f32 %v778, %v783
    %v788 = vmul.f32 %v779, %v783
    %790 = vset.pattern.permute.xlu0 0
    %791 = vperm.xlu0 %790, %v477
    %v792 = vpop.permute.xlu0 %791
    %v794 = vadd.f32 %v785, %v792
    %v795 = vadd.f32 %v786, %v792
    %v796 = vadd.f32 %v787, %v792
    %v797 = vadd.f32 %v788, %v792
    %v798 = vld [vmem:[#allocation2] sm:$0xff]
    %v799 = vld [vmem:[#allocation2 + $0x8] sm:$0xff]
    %v800 = vld [vmem:[#allocation2 + $0x10] sm:$0xff]
    %v801 = vld [vmem:[#allocation2 + $0x18] sm:$0xff]
    %v802 = vld [vmem:[#allocation2 + $0x20] sm:$0xff]
    %v803 = vld [vmem:[#allocation2 + $0x28] sm:$0xff]
    %v804 = vld [vmem:[#allocation2 + $0x30] sm:$0xff]
    %v805 = vld [vmem:[#allocation2 + $0x38] sm:$0xff]
    %v806 = vld [vmem:[#allocation2 + $0x40] sm:$0xff]
    %v807 = vld [vmem:[#allocation2 + $0x48] sm:$0xff]
    %v808 = vld [vmem:[#allocation2 + $0x50] sm:$0xff]
    %v809 = vld [vmem:[#allocation2 + $0x58] sm:$0xff]
    %v810 = vld [vmem:[#allocation2 + $0x60] sm:$0xff]
    %v811 = vld [vmem:[#allocation2 + $0x68] sm:$0xff]
    %v812 = vld [vmem:[#allocation2 + $0x70] sm:$0xff]
    %v813 = vld [vmem:[#allocation2 + $0x78] sm:$0xff]
    %v814 = vld [vmem:[#allocation2 + $0x80] sm:$0xff]
    %v815 = vld [vmem:[#allocation2 + $0x88] sm:$0xff]
    %v816 = vld [vmem:[#allocation2 + $0x90] sm:$0xff]
    %v817 = vld [vmem:[#allocation2 + $0x98] sm:$0xff]
    %v818 = vld [vmem:[#allocation2 + $0xa0] sm:$0xff]
    %v819 = vld [vmem:[#allocation2 + $0xa8] sm:$0xff]
    %v820 = vld [vmem:[#allocation2 + $0xb0] sm:$0xff]
    %v821 = vld [vmem:[#allocation2 + $0xb8] sm:$0xff]
    %v822 = vld [vmem:[#allocation2 + $0xc0] sm:$0xff]
    %v823 = vld [vmem:[#allocation2 + $0xc8] sm:$0xff]
    %v824 = vld [vmem:[#allocation2 + $0xd0] sm:$0xff]
    %v825 = vld [vmem:[#allocation2 + $0xd8] sm:$0xff]
    %v826 = vld [vmem:[#allocation2 + $0xe0] sm:$0xff]
    %v827 = vld [vmem:[#allocation2 + $0xe8] sm:$0xff]
    %v828 = vld [vmem:[#allocation2 + $0xf0] sm:$0xff]
    %v829 = vld [vmem:[#allocation2 + $0xf8] sm:$0xff]
    %v830 = vld [vmem:[#allocation2 + $0x100] sm:$0xff]
    %v831 = vld [vmem:[#allocation2 + $0x108] sm:$0xff]
    %v832 = vld [vmem:[#allocation2 + $0x110] sm:$0xff]
    %v833 = vld [vmem:[#allocation2 + $0x118] sm:$0xff]
    %v834 = vld [vmem:[#allocation2 + $0x120] sm:$0xff]
    %v835 = vld [vmem:[#allocation2 + $0x128] sm:$0xff]
    %v836 = vld [vmem:[#allocation2 + $0x130] sm:$0xff]
    %v837 = vld [vmem:[#allocation2 + $0x138] sm:$0xff]
    %v838 = vld [vmem:[#allocation2 + $0x140] sm:$0xff]
    %v839 = vld [vmem:[#allocation2 + $0x148] sm:$0xff]
    %v840 = vld [vmem:[#allocation2 + $0x150] sm:$0xff]
    %v841 = vld [vmem:[#allocation2 + $0x158] sm:$0xff]
    %v842 = vld [vmem:[#allocation2 + $0x160] sm:$0xff]
    %v843 = vld [vmem:[#allocation2 + $0x168] sm:$0xff]
    %v844 = vld [vmem:[#allocation2 + $0x170] sm:$0xff]
    %v845 = vld [vmem:[#allocation2 + $0x178] sm:$0xff]
    %v846 = vld [vmem:[#allocation2 + $0x180] sm:$0xff]
    %v847 = vld [vmem:[#allocation2 + $0x188] sm:$0xff]
    %v848 = vld [vmem:[#allocation2 + $0x190] sm:$0xff]
    %v849 = vld [vmem:[#allocation2 + $0x198] sm:$0xff]
    %v850 = vld [vmem:[#allocation2 + $0x1a0] sm:$0xff]
    %v851 = vld [vmem:[#allocation2 + $0x1a8] sm:$0xff]
    %v852 = vld [vmem:[#allocation2 + $0x1b0] sm:$0xff]
    %v853 = vld [vmem:[#allocation2 + $0x1b8] sm:$0xff]
    %v854 = vld [vmem:[#allocation2 + $0x1c0] sm:$0xff]
    %v855 = vld [vmem:[#allocation2 + $0x1c8] sm:$0xff]
    %v856 = vld [vmem:[#allocation2 + $0x1d0] sm:$0xff]
    %v857 = vld [vmem:[#allocation2 + $0x1d8] sm:$0xff]
    %v858 = vld [vmem:[#allocation2 + $0x1e0] sm:$0xff]
    %v859 = vld [vmem:[#allocation2 + $0x1e8] sm:$0xff]
    %v860 = vld [vmem:[#allocation2 + $0x1f0] sm:$0xff]
    %v861 = vld [vmem:[#allocation2 + $0x1f8] sm:$0xff]
    %862 = vmatprep.subr.mxu0 %v799
    %863 = vmatpush1.msra.mxu0 %v798
    %864 = vmatprep.subr.mxu0 %v801
    %865 = vmatpush1.msra.mxu0 %v800
    %866 = vmatprep.subr.mxu0 %v803
    %867 = vmatpush1.msra.mxu0 %v802
    %868 = vmatprep.subr.mxu0 %v805
    %869 = vmatpush1.msra.mxu0 %v804
    %870 = vmatprep.subr.mxu0 %v807
    %871 = vmatpush1.msra.mxu0 %v806
    %872 = vmatprep.subr.mxu0 %v809
    %873 = vmatpush1.msra.mxu0 %v808
    %874 = vmatprep.subr.mxu0 %v811
    %875 = vmatpush1.msra.mxu0 %v810
    %876 = vmatprep.subr.mxu0 %v813
    %877 = vmatpush1.msra.mxu0 %v812
    %878 = vmatprep.subr.mxu0 %v815
    %879 = vmatpush1.msra.mxu0 %v814
    %880 = vmatprep.subr.mxu0 %v817
    %881 = vmatpush1.msra.mxu0 %v816
    %882 = vmatprep.subr.mxu0 %v819
    %883 = vmatpush1.msra.mxu0 %v818
    %884 = vmatprep.subr.mxu0 %v821
    %885 = vmatpush1.msra.mxu0 %v820
    %886 = vmatprep.subr.mxu0 %v823
    %887 = vmatpush1.msra.mxu0 %v822
    %888 = vmatprep.subr.mxu0 %v825
    %889 = vmatpush1.msra.mxu0 %v824
    %890 = vmatprep.subr.mxu0 %v827
    %891 = vmatpush1.msra.mxu0 %v826
    %892 = vmatprep.subr.mxu0 %v829
    %893 = vmatpush1.msra.mxu0 %v828
    %894 = vmatprep.subr.mxu0 %v831
    %895 = vmatpush1.msra.mxu0 %v830
    %896 = vmatprep.subr.mxu0 %v833
    %897 = vmatpush1.msra.mxu0 %v832
    %898 = vmatprep.subr.mxu0 %v835
    %899 = vmatpush1.msra.mxu0 %v834
    %900 = vmatprep.subr.mxu0 %v837
    %901 = vmatpush1.msra.mxu0 %v836
    %902 = vmatprep.subr.mxu0 %v839
    %903 = vmatpush1.msra.mxu0 %v838
    %904 = vmatprep.subr.mxu0 %v841
    %905 = vmatpush1.msra.mxu0 %v840
    %906 = vmatprep.subr.mxu0 %v843
    %907 = vmatpush1.msra.mxu0 %v842
    %908 = vmatprep.subr.mxu0 %v845
    %909 = vmatpush1.msra.mxu0 %v844
    %910 = vmatprep.subr.mxu0 %v847
    %911 = vmatpush1.msra.mxu0 %v846
    %912 = vmatprep.subr.mxu0 %v849
    %913 = vmatpush1.msra.mxu0 %v848
    %914 = vmatprep.subr.mxu0 %v851
    %915 = vmatpush1.msra.mxu0 %v850
    %916 = vmatprep.subr.mxu0 %v853
    %917 = vmatpush1.msra.mxu0 %v852
    %918 = vmatprep.subr.mxu0 %v855
    %919 = vmatpush1.msra.mxu0 %v854
    %920 = vmatprep.subr.mxu0 %v857
    %921 = vmatpush1.msra.mxu0 %v856
    %922 = vmatprep.subr.mxu0 %v859
    %923 = vmatpush1.msra.mxu0 %v858
    %924 = vmatprep.subr.mxu0 %v861
    %925 = vmatpush1.msra.mxu0 %v860
    %926 = vmatprep.mubr.f32.mxu0 %v795
    %927 = vmatmul.mubr.f32.gmra.mrb[0].mxu0 %v794
    %v928 = vpop.f32.mrb[0].mxu0
    %v929 = vadd.f32 0.0, %v928
    %v930 = vpop.f32.mrb[0].mxu0
    %v931 = vadd.f32 0.0, %v930
    %932 = vdwg.mxu0
    %933 = vst [vmem:[%s12] sm:$0xff] %v929
    %vm934 = vcmask 130048
    %935 = vst.msk [vmem:[%s12 + $0x8] sm:$0xff] %vm934, %v931
    %936 = vmatprep.subr.mxu0 %v799
    %937 = vmatpush1.msra.mxu0 %v798
    %938 = vmatprep.subr.mxu0 %v801
    %939 = vmatpush1.msra.mxu0 %v800
    %940 = vmatprep.subr.mxu0 %v803
    %941 = vmatpush1.msra.mxu0 %v802
    %942 = vmatprep.subr.mxu0 %v805
    %943 = vmatpush1.msra.mxu0 %v804
    %944 = vmatprep.subr.mxu0 %v807
    %945 = vmatpush1.msra.mxu0 %v806
    %946 = vmatprep.subr.mxu0 %v809
    %947 = vmatpush1.msra.mxu0 %v808
    %948 = vmatprep.subr.mxu0 %v811
    %949 = vmatpush1.msra.mxu0 %v810
    %950 = vmatprep.subr.mxu0 %v813
    %951 = vmatpush1.msra.mxu0 %v812
    %952 = vmatprep.subr.mxu0 %v815
    %953 = vmatpush1.msra.mxu0 %v814
    %954 = vmatprep.subr.mxu0 %v817
    %955 = vmatpush1.msra.mxu0 %v816
    %956 = vmatprep.subr.mxu0 %v819
    %957 = vmatpush1.msra.mxu0 %v818
    %958 = vmatprep.subr.mxu0 %v821
    %959 = vmatpush1.msra.mxu0 %v820
    %960 = vmatprep.subr.mxu0 %v823
    %961 = vmatpush1.msra.mxu0 %v822
    %962 = vmatprep.subr.mxu0 %v825
    %963 = vmatpush1.msra.mxu0 %v824
    %964 = vmatprep.subr.mxu0 %v827
    %965 = vmatpush1.msra.mxu0 %v826
    %966 = vmatprep.subr.mxu0 %v829
    %967 = vmatpush1.msra.mxu0 %v828
    %968 = vmatprep.subr.mxu0 %v831
    %969 = vmatpush1.msra.mxu0 %v830
    %970 = vmatprep.subr.mxu0 %v833
    %971 = vmatpush1.msra.mxu0 %v832
    %972 = vmatprep.subr.mxu0 %v835
    %973 = vmatpush1.msra.mxu0 %v834
    %974 = vmatprep.subr.mxu0 %v837
    %975 = vmatpush1.msra.mxu0 %v836
    %976 = vmatprep.subr.mxu0 %v839
    %977 = vmatpush1.msra.mxu0 %v838
    %978 = vmatprep.subr.mxu0 %v841
    %979 = vmatpush1.msra.mxu0 %v840
    %980 = vmatprep.subr.mxu0 %v843
    %981 = vmatpush1.msra.mxu0 %v842
    %982 = vmatprep.subr.mxu0 %v845
    %983 = vmatpush1.msra.mxu0 %v844
    %984 = vmatprep.subr.mxu0 %v847
    %985 = vmatpush1.msra.mxu0 %v846
    %986 = vmatprep.subr.mxu0 %v849
    %987 = vmatpush1.msra.mxu0 %v848
    %988 = vmatprep.subr.mxu0 %v851
    %989 = vmatpush1.msra.mxu0 %v850
    %990 = vmatprep.subr.mxu0 %v853
    %991 = vmatpush1.msra.mxu0 %v852
    %992 = vmatprep.subr.mxu0 %v855
    %993 = vmatpush1.msra.mxu0 %v854
    %994 = vmatprep.subr.mxu0 %v857
    %995 = vmatpush1.msra.mxu0 %v856
    %996 = vmatprep.subr.mxu0 %v859
    %997 = vmatpush1.msra.mxu0 %v858
    %998 = vmatprep.subr.mxu0 %v861
    %999 = vmatpush1.msra.mxu0 %v860
    %1000 = vmatprep.mubr.f32.mxu0 %v797
    %1001 = vmatmul.mubr.f32.gmra.mrb[0].mxu0 %v796
    %v1002 = vpop.f32.mrb[0].mxu0
    %v1003 = vadd.f32 0.0, %v1002
    %v1004 = vpop.f32.mrb[0].mxu0
    %v1005 = vadd.f32 0.0, %v1004
    %1006 = vdwg.mxu0
    %1007 = vst [vmem:[%s12 + $0x10] sm:$0xff] %v1003
    %1008 = vst.msk [vmem:[%s12 + $0x18] sm:$0xff] %vm934, %v1005
    // Predicated region
    $region54: #{block_forward.1} parent=1 // pred_check
      _
    $region55: #{block_forward.1} parent=1 // pred_check_branch
      %1010 = sbr.rel (0) target = $region57
    $region56: #{block_forward.1} parent=1 // pred_region
      _
    $region57: #{block_forward.1} parent=1 // pred_fallthru
      _
    // Predicated region
    $region58: #{block_forward.1} parent=1 // pred_check
      _
    $region59: #{block_forward.1} parent=1 // pred_check_branch
      %1012 = sbr.rel (0) target = $region61
    $region60: #{block_forward.1} parent=1 // pred_region
      _
    $region61: #{block_forward.1} parent=1 // pred_fallthru
      _
    %1013 = vsyncpa [#allocation3], 1

</llo_original>
